<compile_context>
chip_gen: v5e
topology: v5e:2x2
jax: 0.10.0
libtpu: 0.0.40
codegen_flags: <defaults>
</compile_context>

<pallas_src>
import functools
import math

import jax
import jax.numpy as jnp
from jax.experimental import pallas as pl
from jax.experimental.pallas import tpu as pltpu


_TARGET_BLOCK_BYTES = 2 * 1024 * 1024   # ~2 MiB per operand block (HBM-BW sweet spot)
_MIN_ROW_TILES = 4                       # keep several grid steps for v7x megacore
_VMEM_LIMIT_BYTES = 32 * 1024 * 1024     # explicit scoped-VMEM budget, safe on v5e/v6e/v7x


# ----------------------------- kernels --------------------------------------


def _softmax_kernel(x_ref, o_ref, *, axis):
    """Plain softmax over `axis` of the block (f32 compute)."""
    x = x_ref[...].astype(jnp.float32)
    mx = jnp.max(x, axis=axis, keepdims=True)
    e = jnp.exp(x - mx)
    s = jnp.sum(e, axis=axis, keepdims=True)
    inv = pl.reciprocal(s, approx=False)          # per-row reciprocal (EUP), then bcast-mul
    o_ref[...] = (e * inv).astype(o_ref.dtype)


def _masked_softmax_kernel(x_ref, m_ref, o_ref, *, axis):
    """Masked softmax over `axis` of the block (f32 compute)."""
    x = x_ref[...].astype(jnp.float32)
    keep = m_ref[...] != 0
    xm = jnp.where(keep, x, -1e30)                # f32 compute keeps -1e30 finite
    mx = jnp.max(xm, axis=axis, keepdims=True)
    e = jnp.where(keep, jnp.exp(xm - mx), 0.0)    # masked entries -> exactly 0
    s = jnp.sum(e, axis=axis, keepdims=True)
    s = jnp.where(s == 0.0, 1.0, s)               # fully-masked rows -> zeros, not NaN
    inv = pl.reciprocal(s, approx=False)
    o_ref[...] = (e * inv).astype(o_ref.dtype)


# ----------------------------- tiling helpers --------------------------------


def _sublane_multiple(*dtypes) -> int:
    """Sublane rounding multiple so packed (bf16/int8) blocks stay fully packed."""
    m = 8
    for dt in dtypes:
        isz = jnp.dtype(dt).itemsize
        m = max(m, {4: 8, 2: 16, 1: 32}.get(isz, 8))
    return m


def _row_block(n_rows: int, row_bytes: int, mult: int) -> int:
    """Row-tile size for the (rows, D) path: ~2 MiB per operand, multiple of
    `mult`, and small enough to leave >= _MIN_ROW_TILES grid steps (megacore)."""
    if n_rows <= mult:
        return n_rows                              # block == full extent is always legal
    blk = max(_TARGET_BLOCK_BYTES // max(row_bytes, 1), mult)
    cap = max(-(-n_rows // _MIN_ROW_TILES), mult)  # keep >= ~4 grid tiles when possible
    blk = min(blk, cap, n_rows)
    blk = max((blk // mult) * mult, mult)
    return blk


def _outer_inner_blocks(outer: int, d: int, inner: int, itemsize: int):
    """Block sizes for the (outer, D, inner) path (softmax over middle axis)."""
    # Trailing (lane) block: full inner when modest, else a 128-multiple chunk.
    block_i = inner if inner <= 2048 else 2048
    plane_bytes = d * block_i * itemsize
    block_o = max(_TARGET_BLOCK_BYTES // max(plane_bytes, 1), 1)
    block_o = min(block_o, outer)
    if outer >= 2:                                 # leave >= 2 outer tiles for megacore
        block_o = min(block_o, -(-outer // 2))
    return max(block_o, 1), block_i


# ----------------------------- module ----------------------------------------


class MaskedSoftmax:
    """JAX/Pallas equivalent of the PyTorch MaskedSoftmax module."""

    def __init__(self, dim=None) -> None:
        self.dim = dim

    def _canonical_dim(self, ndim: int) -> int:
        if self.dim is None:
            # Mirrors torch's legacy softmax(dim=None) dim selection.
            return 0 if ndim in (0, 1, 3) else 1
        return self.dim if self.dim >= 0 else self.dim + ndim

    def __call__(self, x: jax.Array, mask: jax.Array = None) -> jax.Array:
        ndim = x.ndim
        dim = self._canonical_dim(ndim)
        shape = x.shape
        D = shape[dim]

        if mask is not None:
            if mask.shape != x.shape:
                # TODO(synk): broadcast-aware mask BlockSpec (reuse the same mask
                # block across broadcast axes) instead of materializing it in HBM.
                mask = jnp.broadcast_to(mask, x.shape)
            if mask.dtype == jnp.bool_:
                # 1 B/elem HBM traffic; compared `!= 0` in-kernel.
                mask = mask.astype(jnp.int8)

        if dim == ndim - 1:
            # ---- softmax over the trailing (lane) axis: flatten to (rows, D) ----
            rows = int(math.prod(shape[:-1])) if ndim > 1 else 1
            x2 = x.reshape(rows, D)
            if mask is not None:
                mult = _sublane_multiple(x.dtype, mask.dtype)
            else:
                mult = _sublane_multiple(x.dtype)
            block_r = _row_block(rows, D * x.dtype.itemsize, mult)
            grid = (pl.cdiv(rows, block_r),)
            spec = pl.BlockSpec((block_r, D), lambda i: (i, 0))
            cparams = pltpu.CompilerParams(
                dimension_semantics=("parallel",),
                vmem_limit_bytes=_VMEM_LIMIT_BYTES)

            if mask is None:
                out2 = pl.pallas_call(
                    functools.partial(_softmax_kernel, axis=1),
                    out_shape=jax.ShapeDtypeStruct((rows, D), x.dtype),
                    grid=grid, in_specs=[spec], out_specs=spec,
                    compiler_params=cparams,
                )(x2)
            else:
                m2 = mask.reshape(rows, D)
                out2 = pl.pallas_call(
                    functools.partial(_masked_softmax_kernel, axis=1),
                    out_shape=jax.ShapeDtypeStruct((rows, D), x.dtype),
                    grid=grid, in_specs=[spec, spec], out_specs=spec,
                    compiler_params=cparams,
                )(x2, m2)
            return out2.reshape(shape)

        # ---- non-trailing softmax dim: view-only reshape to (outer, D, inner) ----
        # Reduce over the middle (sublane) axis in-kernel -> no HBM transpose and
        # the original trailing dims stay lane-dense for full-width stores.
        outer = int(math.prod(shape[:dim])) if dim > 0 else 1
        inner = int(math.prod(shape[dim + 1:]))
        x3 = x.reshape(outer, D, inner)
        block_o, block_i = _outer_inner_blocks(outer, D, inner, x.dtype.itemsize)
        grid = (pl.cdiv(outer, block_o), pl.cdiv(inner, block_i))
        spec = pl.BlockSpec((block_o, D, block_i), lambda i, j: (i, 0, j))
        cparams = pltpu.CompilerParams(
            dimension_semantics=("parallel", "parallel"),
            vmem_limit_bytes=_VMEM_LIMIT_BYTES)

        if mask is None:
            out3 = pl.pallas_call(
                functools.partial(_softmax_kernel, axis=1),
                out_shape=jax.ShapeDtypeStruct((outer, D, inner), x.dtype),
                grid=grid, in_specs=[spec], out_specs=spec,
                compiler_params=cparams,
            )(x3)
        else:
            m3 = mask.reshape(outer, D, inner)
            out3 = pl.pallas_call(
                functools.partial(_masked_softmax_kernel, axis=1),
                out_shape=jax.ShapeDtypeStruct((outer, D, inner), x.dtype),
                grid=grid, in_specs=[spec, spec], out_specs=spec,
                compiler_params=cparams,
            )(x3, m3)
        return out3.reshape(shape)


# ----------------------------- self-test -------------------------------------


def _ref_masked_softmax(x, mask, axis):
    keep = mask != 0
    xm = jnp.where(keep, x.astype(jnp.float32), -1e30)
    mx = jnp.max(xm, axis=axis, keepdims=True)
    e = jnp.where(keep, jnp.exp(xm - mx), 0.0)
    s = jnp.sum(e, axis=axis, keepdims=True)
    s = jnp.where(s == 0.0, 1.0, s)
    return (e / s).astype(x.dtype)


if __name__ == "__main__":
    key = jax.random.PRNGKey(0)
    k1, k2, k3, k4 = jax.random.split(key, 4)

    # 1) Attention-logit-like input, boolean mask (carried as int8), softmax over last dim.
    x1 = jax.random.normal(k1, (2, 4, 16, 128), dtype=jnp.float32)
    m1 = jax.random.bernoulli(k2, p=0.7, shape=x1.shape)       # bool mask

    msm_last = MaskedSoftmax(dim=-1)
    out1 = msm_last(x1, m1)
    ref1 = _ref_masked_softmax(x1, m1, axis=-1)

    # 2) Softmax over a non-trailing dim (dim=1), f32 0/1 mask — exercises the
    #    transpose-free (outer, D, inner) path.
    x2 = jax.random.normal(k3, (2, 8, 16, 16), dtype=jnp.float32)
    m2 = jax.random.bernoulli(k4, p=0.5, shape=x2.shape).astype(jnp.float32)

    msm_c = MaskedSoftmax(dim=1)
    out2 = msm_c(x2, m2)
    ref2 = _ref_masked_softmax(x2, m2, axis=1)

    # 3) mask=None path -> plain softmax.
    out3 = msm_last(x1, None)
    ref3 = jax.nn.softmax(x1, axis=-1)

    # 4) bf16 input with boolean mask (f32 compute in-kernel, bf16 stores).
    x4 = x1.astype(jnp.bfloat16)
    out4 = msm_last(x4, m1)
    ref4 = _ref_masked_softmax(x4, m1, axis=-1)

    jax.block_until_ready((out1, out2, out3, out4))

    assert out1.shape == ref1.shape and out1.dtype == ref1.dtype
    assert out2.shape == ref2.shape and out2.dtype == ref2.dtype
    assert out3.shape == ref3.shape and out3.dtype == ref3.dtype
    assert out4.shape == ref4.shape and out4.dtype == ref4.dtype
    assert bool(jnp.allclose(out1, ref1, atol=2e-6, rtol=1e-5))
    assert bool(jnp.allclose(out2, ref2, atol=2e-6, rtol=1e-5))
    assert bool(jnp.allclose(out3, ref3, atol=2e-6, rtol=1e-5))
    assert bool(jnp.allclose(out4.astype(jnp.float32), ref4.astype(jnp.float32),
                             atol=1e-2, rtol=2e-2))

    print("KERNEL_OK")
</pallas_src>

<mosaic_0001>
module attributes {stable_mosaic.version = 11 : i64} {
  func.func @_masked_softmax_kernel(%arg0: i32, %arg1: memref<32x128xf32, #tpu.memory_space<vmem>>, %arg2: memref<32x128xi8, #tpu.memory_space<vmem>>, %arg3: memref<32x128xf32, #tpu.memory_space<vmem>>) attributes {dimension_semantics = [#tpu.dimension_semantics<parallel>], iteration_bounds = array<i64: 4>, scalar_prefetch = 0 : i64, scratch_operands = 0 : i64, tpu.core_type = #tpu.core_type<tc>, window_params = [{transform_indices = @transform_0, window_bounds = array<i64: 32, 128>}, {transform_indices = @transform_1, window_bounds = array<i64: 32, 128>}, {transform_indices = @transform_2, window_bounds = array<i64: 32, 128>}]} {
    %c0 = arith.constant 0 : index
    %c0_0 = arith.constant 0 : index
    %0 = vector.load %arg1[%c0, %c0_0] : memref<32x128xf32, #tpu.memory_space<vmem>>, vector<32x128xf32>
    %c0_1 = arith.constant 0 : index
    %c0_2 = arith.constant 0 : index
    %1 = vector.load %arg2[%c0_1, %c0_2] : memref<32x128xi8, #tpu.memory_space<vmem>>, vector<32x128xi8>
    %c0_i8 = arith.constant 0 : i8
    %2 = vector.broadcast %c0_i8 : i8 to vector<32x128xi8>
    %3 = arith.cmpi ne, %1, %2 : vector<32x128xi8>
    %cst = arith.constant -1.000000e+30 : f32
    %4 = vector.broadcast %cst : f32 to vector<32x128xf32>
    %5 = arith.select %3, %0, %4 : vector<32x128xi1>, vector<32x128xf32>
    %cst_3 = arith.constant dense<0xFF800000> : vector<32xf32>
    %6 = vector.multi_reduction <maximumf>, %5, %cst_3 [1] : vector<32x128xf32> to vector<32xf32>
    %7 = vector.shape_cast %6 : vector<32xf32> to vector<32x1xf32>
    %8 = vector.broadcast %7 : vector<32x1xf32> to vector<32x128xf32>
    %9 = arith.subf %5, %8 : vector<32x128xf32>
    %10 = math.exp %9 : vector<32x128xf32>
    %cst_4 = arith.constant 0.000000e+00 : f32
    %11 = vector.broadcast %cst_4 : f32 to vector<32x128xf32>
    %12 = arith.select %3, %10, %11 : vector<32x128xi1>, vector<32x128xf32>
    %cst_5 = arith.constant dense<0.000000e+00> : vector<32xf32>
    %13 = vector.multi_reduction <add>, %12, %cst_5 [1] : vector<32x128xf32> to vector<32xf32>
    %14 = vector.shape_cast %13 : vector<32xf32> to vector<32x1xf32>
    %cst_6 = arith.constant 0.000000e+00 : f32
    %15 = vector.broadcast %cst_6 : f32 to vector<32x1xf32>
    %16 = arith.cmpf oeq, %14, %15 : vector<32x1xf32>
    %cst_7 = arith.constant 1.000000e+00 : f32
    %17 = vector.broadcast %cst_7 : f32 to vector<32x1xf32>
    %18 = arith.select %16, %17, %14 : vector<32x1xi1>, vector<32x1xf32>
    %19 = tpu.reciprocal %18 : vector<32x1xf32> -> vector<32x1xf32>
    %20 = vector.broadcast %19 : vector<32x1xf32> to vector<32x128xf32>
    %21 = arith.mulf %12, %20 : vector<32x128xf32>
    %c0_8 = arith.constant 0 : index
    %c0_9 = arith.constant 0 : index
    %22 = vector.load %arg3[%c0_8, %c0_9] : memref<32x128xf32, #tpu.memory_space<vmem>>, vector<32x128xf32>
    tpu.vector_store %arg3[%c0_8, %c0_9], %21 {strides = array<i32>} : memref<32x128xf32, #tpu.memory_space<vmem>>, vector<32x128xf32>,
    return
  }
  func.func @transform_0(%arg0: i32) -> (i32, i32) {
    %c0_i32 = arith.constant 0 : i32
    %c0_i32_0 = arith.constant 0 : i32
    return %arg0, %c0_i32 : i32, i32
  }
  func.func @transform_1(%arg0: i32) -> (i32, i32) {
    %c0_i32 = arith.constant 0 : i32
    %c0_i32_0 = arith.constant 0 : i32
    return %arg0, %c0_i32 : i32, i32
  }
  func.func @transform_2(%arg0: i32) -> (i32, i32) {
    %c0_i32 = arith.constant 0 : i32
    %c0_i32_0 = arith.constant 0 : i32
    return %arg0, %c0_i32 : i32, i32
  }
}

</mosaic_0001>

<llo_original>
// kernel: tpu_custom_call.1
$region0: #{tpu_custom_call.1}
  #allocation0 [shape = 'u32[]', space=smem, size = 0x4, offset = 0x4, fixed_abs, tag = 'smem constant byte address 0x4 - core index']
  #allocation1 [shape = 'u32[72,128]{1,0:T(1,128)}', space=vmem, size = 0x9000, scoped, tag = 'internal scratch']
  %s0 = inlined_call_operand.hbm [shape: f32[128,128], index: 0, kind: input, shape index: {}]
  %s1 = inlined_call_operand.hbm [shape: s8[128,128], index: 1, kind: input, shape index: {}]
  %s2 = inlined_call_operand.hbm [shape: f32[128,128], index: 2, kind: output, shape index: {}]
  %s3 = sld [smem:[#allocation0]]
  $region49: #{tpu_custom_call.1} parent=0
    _
  %s5 = ssub.s32 1, %s3
  %s6 = scalar_select 0, %s5, %s3
  $region1: #{tpu_custom_call.1} parent=0
    #allocation2 [shape = 'u8[32768]{0}', space=vmem, size = 0x8000, scoped, tag = 'input window, operand 0']
    #allocation3 [shape = 's32[2]{0}', space=sflag, size = 0x8, scoped, tag = 'scoped memory for tpu_custom_call.1']
    #allocation4 [shape = 's32[2]{0}', space=sflag, size = 0x8, scoped, tag = 'scoped memory for tpu_custom_call.1']
    #allocation5 [shape = 'u8[8192]{0}', space=vmem, size = 0x2000, scoped, tag = 'input window, operand 1']
    #allocation6 [shape = 's32[2]{0}', space=sflag, size = 0x8, scoped, tag = 'scoped memory for tpu_custom_call.1']
    #allocation7 [shape = 'u8[32768]{0}', space=vmem, size = 0x8000, scoped, tag = 'output window, operand 0']
    %7 = vsyncpa [#allocation3], 0
    %s8 = scalar_lea.sflag [#allocation3], 1
    %9 = vsyncpa %s8, 0
    %10 = vsyncpa [#allocation6], 0
    %s11 = scalar_lea.sflag [#allocation6], 1
    %12 = vsyncpa %s11, 0
    %13 = vsyncpa [#allocation4], 0
    %s14 = scalar_lea.sflag [#allocation4], 1
    %15 = vsyncpa %s14, 0
    loop: start=0, step=1, limit=6
    $region2: #{tpu_custom_call.1} parent=1 // loop_pre_header
      _
    $region3: #{tpu_custom_call.1} parent=1 // loop_header
      %s17 = sphi 0, %s21
      %p18 = scmp.ge.s32.totalorder %s17, 6
      %s27 = sphi 0, %s29
      %s30 = sphi 0, %s27
      %s31 = sphi 0, %s30
      %s47 = sphi 0, %s31
      %s53 = sphi 0, %s55
      %s56 = sphi 0, %s53
      %s57 = sphi 0, %s56
      %s73 = sphi 0, %s57
      %s79 = sphi 0, %s81
      %s82 = sphi 0, %s79
      %s83 = sphi 0, %s82
      %s99 = sphi 0, %s83
    $region4: #{tpu_custom_call.1} parent=1 // loop_header_branch
      %20 = sbr.rel (%p18) target = $region8
    $region5: #{tpu_custom_call.1} parent=1 // loop_body
      %s22 = ssub.s32 %s17, 1
      %s23 = ssub.s32 %s17, 2
      %s24 = sadd.s32 %s17, 1
      %s25 = ssub.s32 %s17, %s24
      %p26 = scmp.eq.s32.totalorder %s25, 0
      %s28 = sadd.s32 %s27, 1
      %s29 = scalar_select %p26, %s27, %s28
      %p32 = pneg %p26
      %p33 = scmp.eq.s32.totalorder %s17, 3
      %p34 = por %p32, %p33
      %p35 = scmp.ne.s32.totalorder %s27, %s30
      %p36 = scmp.eq.s32.totalorder %s17, 0
      %p37 = por %p35, %p36
      %p38 = scmp.ne.s32.totalorder %s27, %s30
      %p39 = scmp.eq.s32.totalorder %s22, 3
      %p40 = por %p38, %p39
      %p41 = scmp.ne.s32.totalorder %s30, %s31
      %p42 = scmp.eq.s32.totalorder %s22, 0
      %p43 = por %p41, %p42
      %p44 = scmp.ne.s32.totalorder %s30, %s31
      %p45 = scmp.eq.s32.totalorder %s23, 3
      %p46 = por %p44, %p45
      %p48 = scmp.ne.s32.totalorder %s31, %s47
      %p49 = scmp.eq.s32.totalorder %s23, 0
      %p50 = por %p48, %p49
      %s51 = ssub.s32 %s17, %s24
      %p52 = scmp.eq.s32.totalorder %s51, 0
      %s54 = sadd.s32 %s53, 1
      %s55 = scalar_select %p52, %s53, %s54
      %p58 = pneg %p52
      %p59 = scmp.eq.s32.totalorder %s17, 3
      %p60 = por %p58, %p59
      %p61 = scmp.ne.s32.totalorder %s53, %s56
      %p62 = scmp.eq.s32.totalorder %s17, 0
      %p63 = por %p61, %p62
      %p64 = scmp.ne.s32.totalorder %s53, %s56
      %p65 = scmp.eq.s32.totalorder %s22, 3
      %p66 = por %p64, %p65
      %p67 = scmp.ne.s32.totalorder %s56, %s57
      %p68 = scmp.eq.s32.totalorder %s22, 0
      %p69 = por %p67, %p68
      %p70 = scmp.ne.s32.totalorder %s56, %s57
      %p71 = scmp.eq.s32.totalorder %s23, 3
      %p72 = por %p70, %p71
      %p74 = scmp.ne.s32.totalorder %s57, %s73
      %p75 = scmp.eq.s32.totalorder %s23, 0
      %p76 = por %p74, %p75
      %s77 = ssub.s32 %s17, %s24
      %p78 = scmp.eq.s32.totalorder %s77, 0
      %s80 = sadd.s32 %s79, 1
      %s81 = scalar_select %p78, %s79, %s80
      %p84 = pneg %p78
      %p85 = scmp.eq.s32.totalorder %s17, 3
      %p86 = por %p84, %p85
      %p87 = scmp.ne.s32.totalorder %s79, %s82
      %p88 = scmp.eq.s32.totalorder %s17, 0
      %p89 = por %p87, %p88
      %p90 = scmp.ne.s32.totalorder %s79, %s82
      %p91 = scmp.eq.s32.totalorder %s22, 3
      %p92 = por %p90, %p91
      %p93 = scmp.ne.s32.totalorder %s82, %s83
      %p94 = scmp.eq.s32.totalorder %s22, 0
      %p95 = por %p93, %p94
      %p96 = scmp.ne.s32.totalorder %s82, %s83
      %p97 = scmp.eq.s32.totalorder %s23, 3
      %p98 = por %p96, %p97
      %p100 = scmp.ne.s32.totalorder %s83, %s99
      %p101 = scmp.eq.s32.totalorder %s23, 0
      %p102 = por %p100, %p101
      %p103 = scmp.le.s32.totalorder 1, %s17
      %p104 = scmp.lt.s32.totalorder %s17, 5
      %p105 = pnand %p103, %p104
      %p106 = pneg %p105
      // Predicated region
      $region9: #{tpu_custom_call.1} parent=5 // pred_check
        _
      $region10: #{tpu_custom_call.1} parent=5 // pred_check_branch
        %108 = sbr.rel (%p105) target = $region12
      $region11: #{tpu_custom_call.1} parent=5 // pred_region
        %s109 = ssub.s32 %s17, 1
      $region12: #{tpu_custom_call.1} parent=5 // pred_fallthru
        _
      %p110 = scmp.lt.s32.totalorder %s17, 4
      // Predicated region
      $region13: #{tpu_custom_call.1} parent=5 // pred_check
        %p111 = pneg %p110
      $region14: #{tpu_custom_call.1} parent=5 // pred_check_branch
        %113 = sbr.rel (%p111) target = $region16
      $region15: #{tpu_custom_call.1} parent=5 // pred_region
        // Predicated region
        $region17: #{tpu_custom_call.1} parent=15 // pred_check
          %p114 = pneg %p37
        $region18: #{tpu_custom_call.1} parent=15 // pred_check_branch
          %116 = sbr.rel (%p114) target = $region20
        $region19: #{tpu_custom_call.1} parent=15 // pred_region
          %s117 = sand.u32 %s27, 1
          %s118 = scalar_lea.sflag [#allocation3], %s117
          %s119 = sand.u32 %s27, 1
          %s120 = smul.addr %s119, 32
          %s121 = scalar_lea.vmem [#allocation2], %s120
          %s122 = smul.u32 4, %s17
          %124 = vsyncadd %s118, 0
          %s125 = smul.addr %s122, 8
          %s126 = scalar_lea.hbm %s0, %s125
          %s127 = sshll.u32 %s126, 4
          %s128 = int_to_ptr.hbm [resolvable:$true] %s127
          %s129 = sshll.u32 %s121, 4
          %s130 = int_to_ptr.vmem [resolvable:$true] %s129
          %135 = dma.hbm_to_vmem [thread:$0]  %s128, 512, %s130, %s118, 128, 128, 8
        $region20: #{tpu_custom_call.1} parent=15 // pred_fallthru
          _
        // Predicated region
        $region21: #{tpu_custom_call.1} parent=15 // pred_check
          %p136 = pneg %p63
        $region22: #{tpu_custom_call.1} parent=15 // pred_check_branch
          %138 = sbr.rel (%p136) target = $region24
        $region23: #{tpu_custom_call.1} parent=15 // pred_region
          %s139 = sand.u32 %s53, 1
          %s140 = scalar_lea.sflag [#allocation6], %s139
          %s141 = sand.u32 %s53, 1
          %s142 = smul.addr %s141, 8
          %s143 = scalar_lea.vmem [#allocation5], %s142
          %145 = vsyncadd %s140, 0
          %s146 = smul.addr %s17, 8
          %s147 = scalar_lea.hbm %s1, %s146
          %s149 = sshll.u32 %s147, 4
          %s150 = int_to_ptr.hbm [resolvable:$true] %s149
          %s151 = sshll.u32 %s143, 4
          %s152 = int_to_ptr.vmem [resolvable:$true] %s151
          %154 = dma.hbm_to_vmem [thread:$0]  %s150, 128, %s152, %s140
        $region24: #{tpu_custom_call.1} parent=15 // pred_fallthru
          _
      $region16: #{tpu_custom_call.1} parent=5 // pred_fallthru
        _
      %p155 = scmp.le.s32.totalorder 1, %s17
      %p156 = scmp.lt.s32.totalorder %s17, 5
      %p157 = pnand %p155, %p156
      %p158 = pneg %p157
      // Predicated region
      $region25: #{tpu_custom_call.1} parent=5 // pred_check
        _
      $region26: #{tpu_custom_call.1} parent=5 // pred_check_branch
        %160 = sbr.rel (%p157) target = $region28
      $region27: #{tpu_custom_call.1} parent=5 // pred_region
        %s161 = ssub.s32 %s17, 1
        %s162 = sand.u32 %s30, 1
        %s163 = scalar_lea.sflag [#allocation3], %s162
        %s164 = sand.u32 %s30, 1
        %s165 = smul.addr %s164, 32
        %s166 = scalar_lea.vmem [#allocation2], %s165
        // Predicated region
        $region29: #{tpu_custom_call.1} parent=27 // pred_check
          %p167 = pneg %p43
        $region30: #{tpu_custom_call.1} parent=27 // pred_check_branch
          %169 = sbr.rel (%p167) target = $region32
        $region31: #{tpu_custom_call.1} parent=27 // pred_region
          %171 = dma.done %s163, 512
        $region32: #{tpu_custom_call.1} parent=27 // pred_fallthru
          _
        %s172 = sand.u32 %s56, 1
        %s173 = scalar_lea.sflag [#allocation6], %s172
        %s174 = sand.u32 %s56, 1
        %s175 = smul.addr %s174, 8
        %s176 = scalar_lea.vmem [#allocation5], %s175
        // Predicated region
        $region33: #{tpu_custom_call.1} parent=27 // pred_check
          %p177 = pneg %p69
        $region34: #{tpu_custom_call.1} parent=27 // pred_check_branch
          %179 = sbr.rel (%p177) target = $region36
        $region35: #{tpu_custom_call.1} parent=27 // pred_region
          %181 = dma.done %s173, 128
        $region36: #{tpu_custom_call.1} parent=27 // pred_fallthru
          _
        %s182 = sand.u32 %s30, 1
        %s183 = scalar_lea.sflag [#allocation3], %s182
        %s184 = sand.u32 %s30, 1
        %s185 = smul.addr %s184, 32
        %s186 = scalar_lea.vmem [#allocation2], %s185
        %p187 = pneg %p43
        %p188 = pneg %p40
        %s189 = sand.u32 %s56, 1
        %s190 = scalar_lea.sflag [#allocation6], %s189
        %s191 = sand.u32 %s56, 1
        %s192 = smul.addr %s191, 8
        %s193 = scalar_lea.vmem [#allocation5], %s192
        %p194 = pneg %p69
        %p195 = pneg %p66
        %p196 = pneg %p95
        %p197 = pneg %p92
        %s198 = sand.u32 %s82, 1
        %s199 = scalar_lea.sflag [#allocation4], %s198
        %s200 = sand.u32 %s82, 1
        %s201 = smul.addr %s200, 32
        %s202 = scalar_lea.vmem [#allocation7], %s201
        %s203 = smul.u32 4, %s22
        %s204 = smul.u32 4, %s22
        %v207 = vld [vmem:[%s166] sm:$0xff]
        %v208 = vld [vmem:[%s166 + $0x8] sm:$0xff]
        %v209 = vld [vmem:[%s166 + $0x10] sm:$0xff]
        %v210 = vld [vmem:[%s166 + $0x18] sm:$0xff]
        %v211 = vld [vmem:[%s176] sm:$0xff]
        %vm212 = vnez %v211
        %v213 = vsel %vm212, 16843009, 0
        %v214 = vunpack.c.0.s8 %v213
        %v215 = vunpack.c.1.s8 %v213
        %v216 = vunpack.c.2.s8 %v213
        %v217 = vunpack.c.3.s8 %v213
        %v218 = vpack.c.b16 %v214, %v214
        %v219 = vpack.c.b8 %v218, %v218
        %v220 = vpack.c.b16 %v215, %v215
        %v221 = vpack.c.b8 %v220, %v220
        %v222 = vpack.c.b16 %v216, %v216
        %v223 = vpack.c.b8 %v222, %v222
        %v224 = vpack.c.b16 %v217, %v217
        %v225 = vpack.c.b8 %v224, %v224
        %vm226 = vnez %v219
        %vm227 = vnez %v221
        %vm228 = vnez %v223
        %vm229 = vnez %v225
        %v230 = vsel %vm226, 16843009, 0
        %v231 = vsel %vm227, 16843009, 0
        %v232 = vsel %vm228, 16843009, 0
        %v233 = vsel %vm229, 16843009, 0
        %v234 = vunpack.c.0.s8 %v230
        %v235 = vunpack.c.0.s8 %v231
        %v236 = vunpack.c.0.s8 %v232
        %v237 = vunpack.c.0.s8 %v233
        %vm238 = vcmp.ne.s32.totalorder %v234, 0
        %vm239 = vcmp.ne.s32.totalorder %v235, 0
        %vm240 = vcmp.ne.s32.totalorder %v236, 0
        %vm241 = vcmp.ne.s32.totalorder %v237, 0
        %v242 = vsel %vm238, %v207, -1e+30
        %v243 = vsel %vm239, %v208, -1e+30
        %v244 = vsel %vm240, %v209, -1e+30
        %v245 = vsel %vm241, %v210, -1e+30
        %246 = vmax.xlane.f32.xlu0 %v242
        %v247 = vpop.xlane.xlu0 %246
        %248 = vmax.xlane.f32.xlu0 %v243
        %v249 = vpop.xlane.xlu0 %248
        %250 = vmax.xlane.f32.xlu0 %v244
        %v251 = vpop.xlane.xlu0 %250
        %252 = vmax.xlane.f32.xlu0 %v245
        %v253 = vpop.xlane.xlu0 %252
        %v254 = vsub.f32 %v242, %v247
        %v255 = vsub.f32 %v243, %v249
        %v256 = vsub.f32 %v244, %v251
        %v257 = vsub.f32 %v245, %v253
        %v258 = vmul.f32 %v254, 1.442695
        %v259 = vpow.pop %v258
        %v260 = vmul.f32 %v255, 1.442695
        %v261 = vpow.pop %v260
        %v262 = vmul.f32 %v256, 1.442695
        %v263 = vpow.pop %v262
        %v264 = vmul.f32 %v257, 1.442695
        %v265 = vpow.pop %v264
        %v266 = vsel %vm238, %v259, 0.0
        %v267 = vsel %vm239, %v261, 0.0
        %v268 = vsel %vm240, %v263, 0.0
        %v269 = vsel %vm241, %v265, 0.0
        %270 = vadd.xlane.f32.xlu0 %v266
        %v271 = vpop.xlane.xlu0 %270
        %272 = vadd.xlane.f32.xlu0 %v267
        %v273 = vpop.xlane.xlu0 %272
        %274 = vadd.xlane.f32.xlu0 %v268
        %v275 = vpop.xlane.xlu0 %274
        %276 = vadd.xlane.f32.xlu0 %v269
        %v277 = vpop.xlane.xlu0 %276
        %vm278 = vcmp.eq.f32.partialorder %v271, 0.0
        %vm279 = vcmp.eq.f32.partialorder %v273, 0.0
        %vm280 = vcmp.eq.f32.partialorder %v275, 0.0
        %vm281 = vcmp.eq.f32.partialorder %v277, 0.0
        %v282 = vsel %vm278, 1.0, %v271
        %v283 = vsel %vm279, 1.0, %v273
        %v284 = vsel %vm280, 1.0, %v275
        %v285 = vsel %vm281, 1.0, %v277
        %v286 = vrcp.pop %v282
        %v287 = vmul.f32 %v282, %v286
        %v288 = vsub.f32 1.0, %v287
        %v289 = vmul.f32 %v286, %v288
        %v290 = vadd.f32 %v286, %v289
        %vm291 = vweird.f32 %v282
        %vm292 = vweird.f32 %v286
        %vm293 = vmor %vm291, %vm292
        %v294 = vsel %vm293, %v286, %v290
        %v295 = vand.u32 2147483647, %v282
        %vm296 = vcmp.eq.f32.partialorder %v295, 8.507059e+37
        %v297 = vand.u32 %v282, 2147483648
        %v298 = vor.u32 1.1754944e-38, %v297
        %v299 = vsel %vm296, %v298, %v294
        %v300 = vrcp.pop %v283
        %v301 = vmul.f32 %v283, %v300
        %v302 = vsub.f32 1.0, %v301
        %v303 = vmul.f32 %v300, %v302
        %v304 = vadd.f32 %v300, %v303
        %vm305 = vweird.f32 %v283
        %vm306 = vweird.f32 %v300
        %vm307 = vmor %vm305, %vm306
        %v308 = vsel %vm307, %v300, %v304
        %v309 = vand.u32 2147483647, %v283
        %vm310 = vcmp.eq.f32.partialorder %v309, 8.507059e+37
        %v311 = vand.u32 %v283, 2147483648
        %v312 = vor.u32 1.1754944e-38, %v311
        %v313 = vsel %vm310, %v312, %v308
        %v314 = vrcp.pop %v284
        %v315 = vmul.f32 %v284, %v314
        %v316 = vsub.f32 1.0, %v315
        %v317 = vmul.f32 %v314, %v316
        %v318 = vadd.f32 %v314, %v317
        %vm319 = vweird.f32 %v284
        %vm320 = vweird.f32 %v314
        %vm321 = vmor %vm319, %vm320
        %v322 = vsel %vm321, %v314, %v318
        %v323 = vand.u32 2147483647, %v284
        %vm324 = vcmp.eq.f32.partialorder %v323, 8.507059e+37
        %v325 = vand.u32 %v284, 2147483648
        %v326 = vor.u32 1.1754944e-38, %v325
        %v327 = vsel %vm324, %v326, %v322
        %v328 = vrcp.pop %v285
        %v329 = vmul.f32 %v285, %v328
        %v330 = vsub.f32 1.0, %v329
        %v331 = vmul.f32 %v328, %v330
        %v332 = vadd.f32 %v328, %v331
        %vm333 = vweird.f32 %v285
        %vm334 = vweird.f32 %v328
        %vm335 = vmor %vm333, %vm334
        %v336 = vsel %vm335, %v328, %v332
        %v337 = vand.u32 2147483647, %v285
        %vm338 = vcmp.eq.f32.partialorder %v337, 8.507059e+37
        %v339 = vand.u32 %v285, 2147483648
        %v340 = vor.u32 1.1754944e-38, %v339
        %v341 = vsel %vm338, %v340, %v336
        %v342 = vmul.f32 %v266, %v299
        %v343 = vmul.f32 %v267, %v313
        %v344 = vmul.f32 %v268, %v327
        %v345 = vmul.f32 %v269, %v341
        %346 = vst [vmem:[%s202] sm:$0xff] %v342
        %347 = vst [vmem:[%s202 + $0x8] sm:$0xff] %v343
        %348 = vst [vmem:[%s202 + $0x10] sm:$0xff] %v344
        %349 = vst [vmem:[%s202 + $0x18] sm:$0xff] %v345
        %s350 = sand.u32 %s82, 1
        %s351 = scalar_lea.sflag [#allocation4], %s350
        %s352 = sand.u32 %s82, 1
        %s353 = smul.addr %s352, 32
        %s354 = scalar_lea.vmem [#allocation7], %s353
        // Predicated region
        $region37: #{tpu_custom_call.1} parent=27 // pred_check
          %p355 = pneg %p92
        $region38: #{tpu_custom_call.1} parent=27 // pred_check_branch
          %357 = sbr.rel (%p355) target = $region40
        $region39: #{tpu_custom_call.1} parent=27 // pred_region
          %s358 = smul.u32 4, %s22
          %360 = vsyncadd %s351, 0
          %s361 = smul.addr %s358, 8
          %s362 = scalar_lea.hbm %s2, %s361
          %s363 = sshll.u32 %s354, 4
          %s364 = int_to_ptr.vmem [resolvable:$true] %s363
          %s365 = sshll.u32 %s362, 4
          %s366 = int_to_ptr.hbm [resolvable:$true] %s365
          %371 = dma.vmem_to_hbm [thread:$0]  %s364, 512, %s366, %s351, 128, 128, 8
        $region40: #{tpu_custom_call.1} parent=27 // pred_fallthru
          _
      $region28: #{tpu_custom_call.1} parent=5 // pred_fallthru
        _
      %p372 = scmp.le.s32.totalorder 2, %s17
      // Predicated region
      $region41: #{tpu_custom_call.1} parent=5 // pred_check
        %p373 = pneg %p372
      $region42: #{tpu_custom_call.1} parent=5 // pred_check_branch
        %375 = sbr.rel (%p373) target = $region44
      $region43: #{tpu_custom_call.1} parent=5 // pred_region
        %s376 = ssub.s32 %s17, 2
        // Predicated region
        $region45: #{tpu_custom_call.1} parent=43 // pred_check
          %p377 = pneg %p98
        $region46: #{tpu_custom_call.1} parent=43 // pred_check_branch
          %379 = sbr.rel (%p377) target = $region48
        $region47: #{tpu_custom_call.1} parent=43 // pred_region
          %s380 = sand.u32 %s83, 1
          %s381 = scalar_lea.sflag [#allocation4], %s380
          %s382 = sand.u32 %s83, 1
          %s383 = smul.addr %s382, 32
          %s384 = scalar_lea.vmem [#allocation7], %s383
          %386 = dma.done %s381, 512
        $region48: #{tpu_custom_call.1} parent=43 // pred_fallthru
          _
      $region44: #{tpu_custom_call.1} parent=5 // pred_fallthru
        _
    $region6: #{tpu_custom_call.1} parent=1 // loop_footer
      %s21 = sadd.s32 1, %s17
    $region7: #{tpu_custom_call.1} parent=1 // loop_footer_branch
      %16 = sbr.rel target = $region3
    $region8: #{tpu_custom_call.1} parent=1 // loop_exit
      _
    %387 = vsyncpa [#allocation3], 1
    %s388 = scalar_lea.sflag [#allocation3], 1
    %389 = vsyncpa %s388, 1
    %390 = vsyncpa [#allocation6], 1
    %s391 = scalar_lea.sflag [#allocation6], 1
    %392 = vsyncpa %s391, 1
    %393 = vsyncpa [#allocation4], 1
    %s394 = scalar_lea.sflag [#allocation4], 1
    %395 = vsyncpa %s394, 1

</llo_original>
